<compile_context>
chip_gen: v5e
topology: v5e:2x2
jax: 0.10.0
libtpu: 0.0.40
codegen_flags: <defaults>
</compile_context>

<pallas_src>
import math

import jax
import jax.numpy as jnp
from jax import lax
from jax.experimental import pallas as pl
from jax.experimental.pallas import tpu as pltpu

INV_SQRT2 = 0.7071067811865476


# ----------------------------- in-kernel helpers ----------------------------


def _erf(x):
  # TODO(synk): lax.erf has no guaranteed Mosaic lowering; use Abramowitz &
  # Stegun 7.1.26 (|abs err| < 1.5e-7, i.e. f32-ulp level) for exact GELU.
  a1, a2, a3, a4, a5 = (0.254829592, -0.284496736, 1.421413741,
                        -1.453152027, 1.061405429)
  p = 0.3275911
  ax = jnp.abs(x)
  t = 1.0 / (1.0 + p * ax)
  poly = ((((a5 * t + a4) * t + a3) * t + a2) * t + a1) * t
  y = 1.0 - poly * jnp.exp(-ax * ax)
  return jnp.where(x >= 0, y, -y)


def _gelu_exact(x):
  # nn.GELU() default = exact (erf-based) GELU.
  return 0.5 * x * (1.0 + _erf(x * INV_SQRT2))


# ----------------------------- Pallas kernel --------------------------------


def mlp_kernel(x_ref, w_fc_ref, b_fc_ref, w_proj_ref, b_proj_ref, o_ref):
  """Fused MLP on one (row_tile, C) slab of tokens."""
  x = x_ref[...]                                              # (TM, C)

  # c_fc: (TM, C) @ (4C, C)^T + b_fc  -> (TM, 4C)
  h = lax.dot_general(x, w_fc_ref[...], (((1,), (1,)), ((), ())),
                      preferred_element_type=jnp.float32)
  h = h + b_fc_ref[...]

  h = _gelu_exact(h)

  # c_proj: (TM, 4C) @ (C, 4C)^T + b_proj -> (TM, C)
  y = lax.dot_general(h, w_proj_ref[...], (((1,), (1,)), ((), ())),
                      preferred_element_type=jnp.float32)
  y = y + b_proj_ref[...]

  # dropout(p=0.0) is the identity in forward.
  o_ref[...] = y.astype(o_ref.dtype)


# ----------------------------- wrapper ---------------------------------------


def mlp_forward(x, w_fc, b_fc, w_proj, b_proj, *, row_tile=256):
  """Computes dropout(c_proj(gelu(c_fc(x)))) with dropout p=0.

  x: (..., C) float; w_fc: (4C, C); b_fc: (4C,); w_proj: (C, 4C); b_proj: (C,)
  """
  orig_shape = x.shape
  C = orig_shape[-1]
  xm = x.reshape(-1, C).astype(jnp.float32)                   # (M, C) slab
  M = xm.shape[0]

  # One tile if everything fits a single step; otherwise tile rows in
  # multiples of 8 (sublane-aligned) and let v7x shard the row grid.
  tm = M if M <= row_tile else row_tile
  grid = (pl.cdiv(M, tm),)

  b_fc2 = b_fc.reshape(1, -1).astype(jnp.float32)             # (1, 4C)
  b_proj2 = b_proj.reshape(1, -1).astype(jnp.float32)         # (1, C)
  w_fc = w_fc.astype(jnp.float32)
  w_proj = w_proj.astype(jnp.float32)

  def _full_spec(arr):
    nd = arr.ndim
    return pl.BlockSpec(arr.shape, lambda i, _nd=nd: (0,) * _nd)

  out = pl.pallas_call(
      mlp_kernel,
      out_shape=jax.ShapeDtypeStruct((M, C), jnp.float32),
      grid=grid,
      in_specs=[pl.BlockSpec((tm, C), lambda i: (i, 0)),
                _full_spec(w_fc), _full_spec(b_fc2),
                _full_spec(w_proj), _full_spec(b_proj2)],
      out_specs=pl.BlockSpec((tm, C), lambda i: (i, 0)),
      compiler_params=pltpu.CompilerParams(
          dimension_semantics=("parallel",)),
  )(xm, w_fc, b_fc2, w_proj, b_proj2)

  return out.reshape(orig_shape)


# ----------------------------- reference & main -------------------------------


def mlp_reference(x, w_fc, b_fc, w_proj, b_proj):
  h = x @ w_fc.T + b_fc
  h = 0.5 * h * (1.0 + jax.scipy.special.erf(h * INV_SQRT2))  # exact GELU
  return h @ w_proj.T + b_proj


if __name__ == "__main__":
  key = jax.random.PRNGKey(0)
  kx, k1, k2, k3, k4 = jax.random.split(key, 5)

  B, T, C = 2, 8, 32                     # (batch, seq, n_embd)
  H = 4 * C

  x = jax.random.normal(kx, (B, T, C), jnp.float32)
  w_fc = jax.random.normal(k1, (H, C), jnp.float32) * 0.02
  b_fc = jax.random.normal(k2, (H,), jnp.float32) * 0.02
  w_proj = jax.random.normal(k3, (C, H), jnp.float32) * (0.02 / math.sqrt(2))
  b_proj = jax.random.normal(k4, (C,), jnp.float32) * 0.02

  y = mlp_forward(x, w_fc, b_fc, w_proj, b_proj)
  y = jax.block_until_ready(y)

  y_ref = mlp_reference(x, w_fc, b_fc, w_proj, b_proj)

  assert y.shape == (B, T, C)
  assert bool(jnp.all(jnp.isfinite(y)))
  err = float(jnp.max(jnp.abs(y - y_ref)))
  assert err < 1e-4, f"max abs error vs reference: {err}"
  print("KERNEL_OK")
</pallas_src>

<mosaic_0001>
module attributes {stable_mosaic.version = 11 : i64} {
  func.func @mlp_kernel(%arg0: i32, %arg1: memref<16x32xf32, #tpu.memory_space<vmem>>, %arg2: memref<128x32xf32, #tpu.memory_space<vmem>>, %arg3: memref<1x128xf32, #tpu.memory_space<vmem>>, %arg4: memref<32x128xf32, #tpu.memory_space<vmem>>, %arg5: memref<1x32xf32, #tpu.memory_space<vmem>>, %arg6: memref<16x32xf32, #tpu.memory_space<vmem>>) attributes {dimension_semantics = [#tpu.dimension_semantics<parallel>], iteration_bounds = array<i64: 1>, scalar_prefetch = 0 : i64, scratch_operands = 0 : i64, tpu.core_type = #tpu.core_type<tc>, window_params = [{transform_indices = @transform_0, window_bounds = array<i64: 16, 32>}, {pipeline_mode = #tpu.pipeline_mode<synchronous>, transform_indices = @transform_1, window_bounds = array<i64: 128, 32>}, {pipeline_mode = #tpu.pipeline_mode<synchronous>, transform_indices = @transform_2, window_bounds = array<i64: 1, 128>}, {pipeline_mode = #tpu.pipeline_mode<synchronous>, transform_indices = @transform_3, window_bounds = array<i64: 32, 128>}, {pipeline_mode = #tpu.pipeline_mode<synchronous>, transform_indices = @transform_4, window_bounds = array<i64: 1, 32>}, {transform_indices = @transform_5, window_bounds = array<i64: 16, 32>}]} {
    %c0 = arith.constant 0 : index
    %c0_0 = arith.constant 0 : index
    %0 = vector.load %arg1[%c0, %c0_0] : memref<16x32xf32, #tpu.memory_space<vmem>>, vector<16x32xf32>
    %c0_1 = arith.constant 0 : index
    %c0_2 = arith.constant 0 : index
    %1 = vector.load %arg2[%c0_1, %c0_2] : memref<128x32xf32, #tpu.memory_space<vmem>>, vector<128x32xf32>
    %cst = arith.constant dense<0.000000e+00> : vector<16x128xf32>
    %2 = tpu.matmul %0, %1, %cst {dimension_numbers = #tpu.dot_dimension_numbers<[1], [1], [0], [0], [0, 0, 1, 0], [], []>} : vector<16x32xf32>, vector<128x32xf32>, vector<16x128xf32> -> vector<16x128xf32>
    %c0_3 = arith.constant 0 : index
    %c0_4 = arith.constant 0 : index
    %3 = vector.load %arg3[%c0_3, %c0_4] : memref<1x128xf32, #tpu.memory_space<vmem>>, vector<1x128xf32>
    %4 = vector.broadcast %3 : vector<1x128xf32> to vector<16x128xf32>
    %5 = arith.addf %2, %4 : vector<16x128xf32>
    %cst_5 = arith.constant 5.000000e-01 : f32
    %6 = vector.broadcast %cst_5 : f32 to vector<16x128xf32>
    %7 = arith.mulf %6, %5 : vector<16x128xf32>
    %cst_6 = arith.constant 0.707106769 : f32
    %8 = vector.broadcast %cst_6 : f32 to vector<16x128xf32>
    %9 = arith.mulf %5, %8 : vector<16x128xf32>
    %10 = math.absf %9 : vector<16x128xf32>
    %cst_7 = arith.constant 0.327591091 : f32
    %11 = vector.broadcast %cst_7 : f32 to vector<16x128xf32>
    %12 = arith.mulf %11, %10 : vector<16x128xf32>
    %cst_8 = arith.constant 1.000000e+00 : f32
    %13 = vector.broadcast %cst_8 : f32 to vector<16x128xf32>
    %14 = arith.addf %13, %12 : vector<16x128xf32>
    %cst_9 = arith.constant 1.000000e+00 : f32
    %15 = vector.broadcast %cst_9 : f32 to vector<16x128xf32>
    %16 = arith.divf %15, %14 : vector<16x128xf32>
    %cst_10 = arith.constant 1.06140542 : f32
    %17 = vector.broadcast %cst_10 : f32 to vector<16x128xf32>
    %18 = arith.mulf %17, %16 : vector<16x128xf32>
    %cst_11 = arith.constant -1.45315206 : f32
    %19 = vector.broadcast %cst_11 : f32 to vector<16x128xf32>
    %20 = arith.addf %18, %19 : vector<16x128xf32>
    %21 = arith.mulf %20, %16 : vector<16x128xf32>
    %cst_12 = arith.constant 1.42141378 : f32
    %22 = vector.broadcast %cst_12 : f32 to vector<16x128xf32>
    %23 = arith.addf %21, %22 : vector<16x128xf32>
    %24 = arith.mulf %23, %16 : vector<16x128xf32>
    %cst_13 = arith.constant -0.284496725 : f32
    %25 = vector.broadcast %cst_13 : f32 to vector<16x128xf32>
    %26 = arith.addf %24, %25 : vector<16x128xf32>
    %27 = arith.mulf %26, %16 : vector<16x128xf32>
    %cst_14 = arith.constant 0.254829586 : f32
    %28 = vector.broadcast %cst_14 : f32 to vector<16x128xf32>
    %29 = arith.addf %27, %28 : vector<16x128xf32>
    %30 = arith.mulf %29, %16 : vector<16x128xf32>
    %cst_15 = arith.constant 0.000000e+00 : f32
    %31 = vector.broadcast %cst_15 : f32 to vector<16x128xf32>
    %32 = arith.subf %31, %10 : vector<16x128xf32>
    %33 = arith.mulf %32, %10 : vector<16x128xf32>
    %34 = math.exp %33 : vector<16x128xf32>
    %35 = arith.mulf %30, %34 : vector<16x128xf32>
    %cst_16 = arith.constant 1.000000e+00 : f32
    %36 = vector.broadcast %cst_16 : f32 to vector<16x128xf32>
    %37 = arith.subf %36, %35 : vector<16x128xf32>
    %cst_17 = arith.constant 0.000000e+00 : f32
    %38 = vector.broadcast %cst_17 : f32 to vector<16x128xf32>
    %39 = arith.cmpf oge, %9, %38 : vector<16x128xf32>
    %cst_18 = arith.constant 0.000000e+00 : f32
    %40 = vector.broadcast %cst_18 : f32 to vector<16x128xf32>
    %41 = arith.subf %40, %37 : vector<16x128xf32>
    %42 = arith.select %39, %37, %41 : vector<16x128xi1>, vector<16x128xf32>
    %cst_19 = arith.constant 1.000000e+00 : f32
    %43 = vector.broadcast %cst_19 : f32 to vector<16x128xf32>
    %44 = arith.addf %43, %42 : vector<16x128xf32>
    %45 = arith.mulf %7, %44 : vector<16x128xf32>
    %c0_20 = arith.constant 0 : index
    %c0_21 = arith.constant 0 : index
    %46 = vector.load %arg4[%c0_20, %c0_21] : memref<32x128xf32, #tpu.memory_space<vmem>>, vector<32x128xf32>
    %cst_22 = arith.constant dense<0.000000e+00> : vector<16x32xf32>
    %47 = tpu.matmul %45, %46, %cst_22 {dimension_numbers = #tpu.dot_dimension_numbers<[1], [1], [0], [0], [0, 0, 1, 0], [], []>} : vector<16x128xf32>, vector<32x128xf32>, vector<16x32xf32> -> vector<16x32xf32>
    %c0_23 = arith.constant 0 : index
    %c0_24 = arith.constant 0 : index
    %48 = vector.load %arg5[%c0_23, %c0_24] : memref<1x32xf32, #tpu.memory_space<vmem>>, vector<1x32xf32>
    %49 = vector.broadcast %48 : vector<1x32xf32> to vector<16x32xf32>
    %50 = arith.addf %47, %49 : vector<16x32xf32>
    %c0_25 = arith.constant 0 : index
    %c0_26 = arith.constant 0 : index
    %51 = vector.load %arg6[%c0_25, %c0_26] : memref<16x32xf32, #tpu.memory_space<vmem>>, vector<16x32xf32>
    tpu.vector_store %arg6[%c0_25, %c0_26], %50 {strides = array<i32>} : memref<16x32xf32, #tpu.memory_space<vmem>>, vector<16x32xf32>,
    return
  }
  func.func @transform_0(%arg0: i32) -> (i32, i32) {
    %c0_i32 = arith.constant 0 : i32
    %c0_i32_0 = arith.constant 0 : i32
    return %arg0, %c0_i32 : i32, i32
  }
  func.func @transform_1(%arg0: i32) -> (i32, i32) {
    %c0_i32 = arith.constant 0 : i32
    %c0_i32_0 = arith.constant 0 : i32
    %c0_i32_1 = arith.constant 0 : i32
    return %c0_i32, %c0_i32_0 : i32, i32
  }
  func.func @transform_2(%arg0: i32) -> (i32, i32) {
    %c0_i32 = arith.constant 0 : i32
    %c0_i32_0 = arith.constant 0 : i32
    %c0_i32_1 = arith.constant 0 : i32
    return %c0_i32, %c0_i32_0 : i32, i32
  }
  func.func @transform_3(%arg0: i32) -> (i32, i32) {
    %c0_i32 = arith.constant 0 : i32
    %c0_i32_0 = arith.constant 0 : i32
    %c0_i32_1 = arith.constant 0 : i32
    return %c0_i32, %c0_i32_0 : i32, i32
  }
  func.func @transform_4(%arg0: i32) -> (i32, i32) {
    %c0_i32 = arith.constant 0 : i32
    %c0_i32_0 = arith.constant 0 : i32
    %c0_i32_1 = arith.constant 0 : i32
    return %c0_i32, %c0_i32_0 : i32, i32
  }
  func.func @transform_5(%arg0: i32) -> (i32, i32) {
    %c0_i32 = arith.constant 0 : i32
    %c0_i32_0 = arith.constant 0 : i32
    return %arg0, %c0_i32 : i32, i32
  }
}

</mosaic_0001>

<llo_original>
// kernel: tpu_custom_call.1
$region0: #{tpu_custom_call.1}
  #allocation0 [shape = 'u32[]', space=smem, size = 0x4, offset = 0x4, fixed_abs, tag = 'smem constant byte address 0x4 - core index']
  #allocation1 [shape = 'u32[72,128]{1,0:T(1,128)}', space=vmem, size = 0x9000, scoped, tag = 'internal scratch']
  %s0 = inlined_call_operand.vmem [shape: f32[16,32], index: 0, kind: input, shape index: {}]
  %s1 = inlined_call_operand.vmem [shape: f32[128,32], index: 1, kind: input, shape index: {}]
  %s2 = inlined_call_operand.vmem [shape: f32[1,128], index: 2, kind: input, shape index: {}]
  %s3 = inlined_call_operand.vmem [shape: f32[32,128], index: 3, kind: input, shape index: {}]
  %s4 = inlined_call_operand.vmem [shape: f32[1,32], index: 4, kind: input, shape index: {}]
  %s5 = inlined_call_operand.hbm [shape: f32[16,32], index: 5, kind: output, shape index: {}]
  %s6 = sld [smem:[#allocation0]]
  $region30: #{tpu_custom_call.1} parent=0
    _
  %s8 = ssub.s32 1, %s6
  %s9 = scalar_select 0, %s8, %s6
  $region1: #{tpu_custom_call.1} parent=0
    #allocation2 [shape = 'u8[8192]{0}', space=vmem, size = 0x2000, scoped, tag = 'output window, operand 0, single buffered']
    #allocation3 [shape = 's32[1]{0}', space=sflag, size = 0x4, scoped, tag = 'scoped memory for tpu_custom_call.1']
    %10 = vsyncpa [#allocation3], 0
    // Predicated region
    $region2: #{tpu_custom_call.1} parent=1 // pred_check
      _
    $region3: #{tpu_custom_call.1} parent=1 // pred_check_branch
      %12 = sbr.rel (0) target = $region5
    $region4: #{tpu_custom_call.1} parent=1 // pred_region
      _
    $region5: #{tpu_custom_call.1} parent=1 // pred_fallthru
      _
    // Predicated region
    $region6: #{tpu_custom_call.1} parent=1 // pred_check
      _
    $region7: #{tpu_custom_call.1} parent=1 // pred_check_branch
      %14 = sbr.rel (0) target = $region9
    $region8: #{tpu_custom_call.1} parent=1 // pred_region
      _
    $region9: #{tpu_custom_call.1} parent=1 // pred_fallthru
      _
    // Predicated region
    $region10: #{tpu_custom_call.1} parent=1 // pred_check
      _
    $region11: #{tpu_custom_call.1} parent=1 // pred_check_branch
      %16 = sbr.rel (0) target = $region13
    $region12: #{tpu_custom_call.1} parent=1 // pred_region
      _
    $region13: #{tpu_custom_call.1} parent=1 // pred_fallthru
      _
    // Predicated region
    $region14: #{tpu_custom_call.1} parent=1 // pred_check
      _
    $region15: #{tpu_custom_call.1} parent=1 // pred_check_branch
      %18 = sbr.rel (0) target = $region17
    $region16: #{tpu_custom_call.1} parent=1 // pred_region
      _
    $region17: #{tpu_custom_call.1} parent=1 // pred_fallthru
      _
    // Predicated region
    $region18: #{tpu_custom_call.1} parent=1 // pred_check
      _
    $region19: #{tpu_custom_call.1} parent=1 // pred_check_branch
      %20 = sbr.rel (0) target = $region21
    $region20: #{tpu_custom_call.1} parent=1 // pred_region
      _
    $region21: #{tpu_custom_call.1} parent=1 // pred_fallthru
      _
    %v21 = vld [vmem:[%s0] sm:$0xff]
    %v22 = vld [vmem:[%s0 + $0x8] sm:$0xff]
    %v23 = vld [vmem:[%s1] sm:$0xff]
    %v24 = vld [vmem:[%s1 + $0x8] sm:$0xff]
    %v25 = vld [vmem:[%s1 + $0x10] sm:$0xff]
    %v26 = vld [vmem:[%s1 + $0x18] sm:$0xff]
    %v27 = vld [vmem:[%s1 + $0x20] sm:$0xff]
    %v28 = vld [vmem:[%s1 + $0x28] sm:$0xff]
    %v29 = vld [vmem:[%s1 + $0x30] sm:$0xff]
    %v30 = vld [vmem:[%s1 + $0x38] sm:$0xff]
    %v31 = vld [vmem:[%s1 + $0x40] sm:$0xff]
    %v32 = vld [vmem:[%s1 + $0x48] sm:$0xff]
    %v33 = vld [vmem:[%s1 + $0x50] sm:$0xff]
    %v34 = vld [vmem:[%s1 + $0x58] sm:$0xff]
    %v35 = vld [vmem:[%s1 + $0x60] sm:$0xff]
    %v36 = vld [vmem:[%s1 + $0x68] sm:$0xff]
    %v37 = vld [vmem:[%s1 + $0x70] sm:$0xff]
    %v38 = vld [vmem:[%s1 + $0x78] sm:$0xff]
    %v39 = vld [vmem:[%s2] sm:$0x1]
    %v41 = vperm.slane %v39, 0
    %vm43 = vcmask 261120
    %v45 = vsel %vm43, %v21, 0
    %v48 = vsel %vm43, %v22, 0
    %v51 = vsel %vm43, %v23, 0
    %v54 = vsel %vm43, %v24, 0
    %v57 = vsel %vm43, %v25, 0
    %v60 = vsel %vm43, %v26, 0
    %v63 = vsel %vm43, %v27, 0
    %v66 = vsel %vm43, %v28, 0
    %v69 = vsel %vm43, %v29, 0
    %v72 = vsel %vm43, %v30, 0
    %v75 = vsel %vm43, %v31, 0
    %v78 = vsel %vm43, %v32, 0
    %v81 = vsel %vm43, %v33, 0
    %v84 = vsel %vm43, %v34, 0
    %v87 = vsel %vm43, %v35, 0
    %v90 = vsel %vm43, %v36, 0
    %v93 = vsel %vm43, %v37, 0
    %v96 = vsel %vm43, %v38, 0
    %98 = vmatpush.xpose.msra.mxu0 %v96
    %99 = vmatpush.xpose.msra.mxu0 %v93
    %100 = vmatpush.xpose.msra.mxu0 %v90
    %101 = vmatpush.xpose.msra.mxu0 %v87
    %102 = vmatpush.xpose.msra.mxu0 %v84
    %103 = vmatpush.xpose.msra.mxu0 %v81
    %104 = vmatpush.xpose.msra.mxu0 %v78
    %105 = vmatpush.xpose.msra.mxu0 %v75
    %106 = vmatpush.xpose.msra.mxu0 %v72
    %107 = vmatpush.xpose.msra.mxu0 %v69
    %108 = vmatpush.xpose.msra.mxu0 %v66
    %109 = vmatpush.xpose.msra.mxu0 %v63
    %110 = vmatpush.xpose.msra.mxu0 %v60
    %111 = vmatpush.xpose.msra.mxu0 %v57
    %112 = vmatpush.xpose.msra.mxu0 %v54
    %113 = vmatpush.xpose.msra.mxu0 %v51
    %114 = vmatmul.f32.gmra.mxu0 %v45
    %v115 = vpop.f32.mrf.mxu0
    %v116 = vadd.f32 %v41, %v115
    %117 = vmatmul.f32.gmra.mxu0 %v48
    %v118 = vpop.f32.mrf.mxu0
    %v119 = vadd.f32 %v41, %v118
    %120 = vdwg.mxu0
    %v121 = vmul.f32 %v116, 0.5
    %v122 = vmul.f32 %v119, 0.5
    %v123 = vmul.f32 %v116, 0.70710677
    %v124 = vmul.f32 %v119, 0.70710677
    %v125 = vand.u32 2147483647, %v123
    %v126 = vand.u32 2147483647, %v124
    %v127 = vmul.f32 %v125, 0.3275911
    %v128 = vmul.f32 %v126, 0.3275911
    %v129 = vadd.f32 %v127, 1.0
    %v130 = vadd.f32 %v128, 1.0
    %v131 = vrcp.pop %v129
    %v132 = vmul.f32 %v129, %v131
    %v133 = vsub.f32 1.0, %v132
    %v134 = vmul.f32 %v131, %v133
    %v135 = vadd.f32 %v131, %v134
    %vm136 = vweird.f32 %v129
    %vm137 = vweird.f32 %v131
    %vm138 = vmor %vm136, %vm137
    %v139 = vsel %vm138, %v131, %v135
    %v140 = vand.u32 2147483647, %v129
    %vm141 = vcmp.eq.f32.partialorder %v140, 8.507059e+37
    %v142 = vand.u32 %v129, 2147483648
    %v143 = vor.u32 1.1754944e-38, %v142
    %v144 = vsel %vm141, %v143, %v139
    %v145 = vmul.f32 1.0, %v144
    %v146 = vrcp.pop %v130
    %v147 = vmul.f32 %v130, %v146
    %v148 = vsub.f32 1.0, %v147
    %v149 = vmul.f32 %v146, %v148
    %v150 = vadd.f32 %v146, %v149
    %vm151 = vweird.f32 %v130
    %vm152 = vweird.f32 %v146
    %vm153 = vmor %vm151, %vm152
    %v154 = vsel %vm153, %v146, %v150
    %v155 = vand.u32 2147483647, %v130
    %vm156 = vcmp.eq.f32.partialorder %v155, 8.507059e+37
    %v157 = vand.u32 %v130, 2147483648
    %v158 = vor.u32 1.1754944e-38, %v157
    %v159 = vsel %vm156, %v158, %v154
    %v160 = vmul.f32 1.0, %v159
    %v161 = vmul.f32 %v145, 1.0614054
    %v162 = vmul.f32 %v160, 1.0614054
    %v163 = vadd.f32 %v161, -1.4531521
    %v164 = vadd.f32 %v162, -1.4531521
    %v165 = vmul.f32 %v163, %v145
    %v166 = vmul.f32 %v164, %v160
    %v167 = vadd.f32 %v165, 1.4214138
    %v168 = vadd.f32 %v166, 1.4214138
    %v169 = vmul.f32 %v167, %v145
    %v170 = vmul.f32 %v168, %v160
    %v171 = vadd.f32 %v169, -0.28449672
    %v172 = vadd.f32 %v170, -0.28449672
    %v173 = vmul.f32 %v171, %v145
    %v174 = vmul.f32 %v172, %v160
    %v175 = vadd.f32 %v173, 0.2548296
    %v176 = vadd.f32 %v174, 0.2548296
    %v177 = vmul.f32 %v175, %v145
    %v178 = vmul.f32 %v176, %v160
    %v179 = vsub.f32 0.0, %v125
    %v180 = vsub.f32 0.0, %v126
    %v181 = vmul.f32 %v179, %v125
    %v182 = vmul.f32 %v180, %v126
    %v183 = vmul.f32 %v181, 1.442695
    %v184 = vpow.pop %v183
    %v185 = vmul.f32 %v182, 1.442695
    %v186 = vpow.pop %v185
    %v187 = vmul.f32 %v177, %v184
    %v188 = vmul.f32 %v178, %v186
    %v189 = vsub.f32 1.0, %v187
    %v190 = vsub.f32 1.0, %v188
    %vm191 = vcmp.ge.f32.partialorder %v123, 0.0
    %vm192 = vcmp.ge.f32.partialorder %v124, 0.0
    %v193 = vsub.f32 0.0, %v189
    %v194 = vsub.f32 0.0, %v190
    %v195 = vsel %vm191, %v189, %v193
    %v196 = vsel %vm192, %v190, %v194
    %v197 = vadd.f32 %v195, 1.0
    %v198 = vadd.f32 %v196, 1.0
    %v199 = vmul.f32 %v121, %v197
    %v200 = vmul.f32 %v122, %v198
    %v201 = vld [vmem:[%s3] sm:$0xff]
    %v202 = vld [vmem:[%s3 + $0x8] sm:$0xff]
    %v203 = vld [vmem:[%s3 + $0x10] sm:$0xff]
    %v204 = vld [vmem:[%s3 + $0x18] sm:$0xff]
    %v205 = vld [vmem:[%s4] sm:$0x1]
    %v207 = vperm.slane %v205, 0
    %209 = vmatpush.xpose.msra.mxu0 0.0
    %210 = vmatpush.xpose.msra.mxu0 0.0
    %211 = vmatpush.xpose.msra.mxu0 0.0
    %212 = vmatpush.xpose.msra.mxu0 0.0
    %213 = vmatpush.xpose.msra.mxu0 0.0
    %214 = vmatpush.xpose.msra.mxu0 0.0
    %215 = vmatpush.xpose.msra.mxu0 0.0
    %216 = vmatpush.xpose.msra.mxu0 0.0
    %217 = vmatpush.xpose.msra.mxu0 0.0
    %218 = vmatpush.xpose.msra.mxu0 0.0
    %219 = vmatpush.xpose.msra.mxu0 0.0
    %220 = vmatpush.xpose.msra.mxu0 0.0
    %221 = vmatpush.xpose.msra.mxu0 %v204
    %222 = vmatpush.xpose.msra.mxu0 %v203
    %223 = vmatpush.xpose.msra.mxu0 %v202
    %224 = vmatpush.xpose.msra.mxu0 %v201
    %225 = vmatmul.f32.gmra.mxu0 %v199
    %v226 = vpop.f32.mrf.mxu0
    %v227 = vadd.f32 %v207, %v226
    %228 = vmatmul.f32.gmra.mxu0 %v200
    %v229 = vpop.f32.mrf.mxu0
    %v230 = vadd.f32 %v207, %v229
    %231 = vdwg.mxu0
    %232 = vst.msk [vmem:[#allocation2] sm:$0xff] %vm43, %v227
    %233 = vst.msk [vmem:[#allocation2 + $0x8] sm:$0xff] %vm43, %v230
    // Predicated region
    $region22: #{tpu_custom_call.1} parent=1 // pred_check
      _
    $region23: #{tpu_custom_call.1} parent=1 // pred_check_branch
      %235 = sbr.rel (0) target = $region25
    $region24: #{tpu_custom_call.1} parent=1 // pred_region
      %237 = vsyncadd [#allocation3], 0
      %s238 = sshll.u32 [#allocation2], 4
      %s239 = int_to_ptr.vmem [resolvable:$true] %s238
      %s240 = sshll.u32 %s5, 4
      %s241 = int_to_ptr.hbm [resolvable:$true] %s240
      %246 = dma.vmem_to_hbm [thread:$0]  %s239, 256, %s241, [#allocation3], 128, 128, 8
    $region25: #{tpu_custom_call.1} parent=1 // pred_fallthru
      _
    // Predicated region
    $region26: #{tpu_custom_call.1} parent=1 // pred_check
      _
    $region27: #{tpu_custom_call.1} parent=1 // pred_check_branch
      %248 = sbr.rel (0) target = $region29
    $region28: #{tpu_custom_call.1} parent=1 // pred_region
      %250 = dma.done [#allocation3], 256
    $region29: #{tpu_custom_call.1} parent=1 // pred_fallthru
      _
    %251 = vsyncpa [#allocation3], 1

</llo_original>
